<compile_context>
chip_gen: v5e
topology: v5e:2x2
jax: 0.10.0
libtpu: 0.0.40
codegen_flags: <defaults>
</compile_context>

<pallas_src>
import jax
import jax.numpy as jnp
from jax import lax
from jax.experimental import pallas as pl
from jax.experimental.pallas import tpu as pltpu


def _round_up(x, m):
    return ((x + m - 1) // m) * m


def _round_down(x, m):
    return (x // m) * m


# --------------------------------------------------------------------------- #
# Kernel 1: streaming length-masked mean pooling over time.
# grid = (B, T_tiles); each step streams one (tile_t, Dup) feature tile and
# accumulates the masked time-sum into the resident (1, 1, Dup) output block
# (output block index constant across the T axis). Finalized with the mean
# divide on the last T step.
# --------------------------------------------------------------------------- #
def masked_mean_pool_kernel(lens_ref, feat_ref, pooled_ref):
    b = pl.program_id(0)
    t = pl.program_id(1)
    tile_t = feat_ref.shape[1]

    @pl.when(t == 0)
    def _init():
        pooled_ref[...] = jnp.zeros_like(pooled_ref)

    lens_b = lens_ref[b]                                              # i32 scalar (SMEM)

    # Skip tiles that lie entirely past this utterance's length (ragged batches).
    @pl.when(t * tile_t < lens_b)
    def _accum():
        # frame indices covered by this tile, masked against the sequence length
        frame = lax.broadcasted_iota(jnp.int32, (tile_t, 1), 0) + t * tile_t
        valid = frame < lens_b                                        # (tile_t, 1) bool

        # masked time-sum for this tile, accumulated in f32 (features may be bf16).
        # jnp.where (not multiply) so stale/garbage rows of a partial edge tile
        # can never poison the sum with NaN/Inf.
        tile = feat_ref[0].astype(jnp.float32)                        # (tile_t, Dup)
        tile = jnp.where(valid, tile, 0.0)
        psum = jnp.sum(tile, axis=0, keepdims=True)                   # (1, Dup)
        pooled_ref[...] += psum[None]                                 # (1, 1, Dup)

    @pl.when(t == pl.num_programs(1) - 1)
    def _finalize():
        denom = jnp.maximum(lens_b.astype(jnp.float32), 1.0)          # zero-length guard
        pooled_ref[...] = pooled_ref[...] / denom


# --------------------------------------------------------------------------- #
# Kernel 2: tiny epilogue — projector + classifier + class-balanced soft-target
# cross entropy ('mean' reduction). All operands are small and VMEM-resident.
# Note: mean over masked frames of (x @ Wp + bp) == pooled_mean @ Wp + bp, so the
# per-frame bias add of the original is applied once here.
# --------------------------------------------------------------------------- #
def head_loss_kernel(pooled_ref, wp_ref, bp_ref, wc_ref, bc_ref, lab_ref, cw_ref,
                     logits_ref, loss_ref):
    B = lab_ref.shape[0]

    proj = jnp.dot(pooled_ref[...], wp_ref[...],
                   preferred_element_type=jnp.float32) + bp_ref[...]      # (B, Dp)
    logits = jnp.dot(proj, wc_ref[...],
                     preferred_element_type=jnp.float32) + bc_ref[...]    # (B, C)
    logits_ref[...] = logits

    labels = lab_ref[...]                                                 # (B, C), rows sum to 1
    w = jnp.sum(cw_ref[...] * labels, axis=1, keepdims=True)              # (B, 1) sample weight
    m = jnp.max(logits, axis=1, keepdims=True)
    z = logits - m
    logZ = jnp.log(jnp.sum(jnp.exp(z), axis=1, keepdims=True))
    logprobs = z - logZ                                                   # log_softmax
    batchloss = -jnp.sum(w * labels * logprobs, axis=1, keepdims=True)    # (B, 1)
    loss_ref[...] = jnp.sum(batchloss, axis=0, keepdims=True) * (1.0 / B)  # mean reduction


def downstream_expert_forward(features, lengths, labels, params, *, tile_t=None):
    """features: (B, T, Dup) zero-padded, any float dtype (bf16 halves HBM traffic);
       lengths: (B,) int; labels: (B, C) soft targets; params: f32."""
    B, T, Dup = features.shape
    C = labels.shape[1]

    # ---- sublane alignment: T and tile_t must be multiples of 8. Padding (if any)
    #      is at most 7 frames; the length mask ignores the padded frames.
    T8 = _round_up(T, 8)
    if T8 != T:
        features = jnp.pad(features, ((0, 0), (0, T8 - T), (0, 0)))

    # ---- choose a time-tile: multiple of 8 sublanes, double-buffered tile kept
    #      well inside the smallest VMEM budget (v7x: 64 MiB phys / 32 MiB scoped).
    itemsize = jnp.dtype(features.dtype).itemsize
    if tile_t is None:
        budget_rows = max(8, (6 * 1024 * 1024) // (Dup * itemsize))   # ~6 MiB / buffer
        tile_t = min(T8, _round_down(budget_rows, 8))
    tile_t = max(8, min(_round_up(tile_t, 8), T8))
    n_t = pl.cdiv(T8, tile_t)

    lengths_i32 = lengths.astype(jnp.int32)

    # ---- streaming pooling kernel (grid-pipelined feature DMA) ----
    pooled = pl.pallas_call(
        masked_mean_pool_kernel,
        out_shape=jax.ShapeDtypeStruct((B, 1, Dup), jnp.float32),
        grid_spec=pltpu.PrefetchScalarGridSpec(
            num_scalar_prefetch=1,                       # lengths -> SMEM
            grid=(B, n_t),
            in_specs=[pl.BlockSpec((1, tile_t, Dup), lambda b, t, lens: (b, t, 0))],
            out_specs=pl.BlockSpec((1, 1, Dup), lambda b, t, lens: (b, 0, 0)),
        ),
        compiler_params=pltpu.CompilerParams(
            dimension_semantics=("parallel", "arbitrary"),
            vmem_limit_bytes=32 * 1024 * 1024,
        ),
    )(lengths_i32, features)

    pooled2d = pooled.reshape(B, Dup)

    # ---- tiny epilogue kernel: projector + classifier + loss (whole arrays in VMEM) ----
    vmem = pl.BlockSpec(memory_space=pltpu.MemorySpace.VMEM)
    logits, loss = pl.pallas_call(
        head_loss_kernel,
        out_shape=(jax.ShapeDtypeStruct((B, C), jnp.float32),
                   jax.ShapeDtypeStruct((1, 1), jnp.float32)),
        in_specs=[vmem] * 7,
        out_specs=(vmem, vmem),
    )(pooled2d,
      params["w_proj"].astype(jnp.float32),
      params["b_proj"].astype(jnp.float32),
      params["w_cls"].astype(jnp.float32),
      params["b_cls"].astype(jnp.float32),
      labels.astype(jnp.float32),
      params["class_weights"].astype(jnp.float32))
    return loss[0, 0], logits


def _reference(features, lengths, labels, params):
    """Pure-JAX reference in the original op order: project per-frame, then pool."""
    feats = features.astype(jnp.float32)
    proj = feats @ params["w_proj"] + params["b_proj"][0]
    B, T, Dp = proj.shape
    mask = (jnp.arange(T)[None, :] < lengths[:, None]).astype(jnp.float32)
    pooled = (proj * mask[:, :, None]).sum(1) / lengths[:, None].astype(jnp.float32)
    logits = pooled @ params["w_cls"] + params["b_cls"][0]
    w = jnp.sum(params["class_weights"][0][None, :] * labels, axis=1, keepdims=True)
    logprobs = jax.nn.log_softmax(logits, axis=1)
    batchloss = -jnp.sum(w * labels * logprobs, axis=1)
    return jnp.mean(batchloss), logits


if __name__ == "__main__":
    B, T, Dup, Dp, C = 2, 16, 64, 32, 9   # 9 emotion classes (matches docstring weights)

    key = jax.random.PRNGKey(0)
    k_feat, k_lab, k_wp, k_wc = jax.random.split(key, 4)

    # variable-length "utterance" features, zero-padded like pad_sequence(batch_first=True)
    lengths = jnp.array([T, T - 5], dtype=jnp.int32)
    features = jax.random.normal(k_feat, (B, T, Dup), dtype=jnp.float32)
    # make values bf16-representable so the bf16-streamed kernel input carries exactly
    # the same information the f32 reference sees
    features = features.astype(jnp.bfloat16).astype(jnp.float32)
    pad_mask = (jnp.arange(T)[None, :] < lengths[:, None]).astype(jnp.float32)
    features = features * pad_mask[:, :, None]

    # soft-target labels (each row a valid distribution)
    labels = jax.nn.softmax(jax.random.normal(k_lab, (B, C), dtype=jnp.float32), axis=1)

    params = {
        "w_proj": jax.random.normal(k_wp, (Dup, Dp), dtype=jnp.float32) / jnp.sqrt(Dup),
        "b_proj": jnp.zeros((1, Dp), jnp.float32),
        "w_cls": jax.random.normal(k_wc, (Dp, C), dtype=jnp.float32) / jnp.sqrt(Dp),
        "b_cls": jnp.zeros((1, C), jnp.float32),
        # class-balanced weights from the module's docstring (9 classes)
        "class_weights": jnp.array([[0.2139, 0.3445, 0.4665, 3.3741, 0.3337,
                                     2.2446, 0.2398, 1.3928, 0.3900]], jnp.float32),
    }

    # stream features as bf16 (halves HBM bytes; in-kernel accumulation stays f32)
    features_bf16 = features.astype(jnp.bfloat16)

    # tile_t=8 -> grid (B, 2): exercises the pipelined T axis at toy sizes
    loss, logits = downstream_expert_forward(features_bf16, lengths, labels, params, tile_t=8)
    loss = jax.block_until_ready(loss)
    logits = jax.block_until_ready(logits)

    ref_loss, ref_logits = _reference(features, lengths, labels, params)

    # Tolerance note: the kernel pools before projecting (mathematically identical,
    # flagged op-order change); per-element results may differ by TPU default
    # matmul-precision rounding, hence a few-1e-3 tolerance.
    assert jnp.allclose(logits, ref_logits, atol=5e-3, rtol=5e-3), (logits, ref_logits)
    assert jnp.allclose(loss, ref_loss, atol=5e-3, rtol=5e-3), (loss, ref_loss)

    print("KERNEL_OK")
</pallas_src>

<mosaic_0001>
module attributes {stable_mosaic.version = 11 : i64} {
  func.func @masked_mean_pool_kernel(%arg0: i32, %arg1: i32, %arg2: memref<2xi32, #tpu.memory_space<smem>>, %arg3: memref<1x8x64xbf16, #tpu.memory_space<vmem>>, %arg4: memref<1x1x64xf32, #tpu.memory_space<vmem>>) attributes {dimension_semantics = [#tpu.dimension_semantics<parallel>, #tpu.dimension_semantics<arbitrary>], iteration_bounds = array<i64: 2, 2>, scalar_prefetch = 1 : i64, scratch_operands = 0 : i64, tpu.core_type = #tpu.core_type<tc>, window_params = [{transform_indices = @transform_0, window_bounds = array<i64: 1, 8, 64>}, {transform_indices = @transform_1, window_bounds = array<i64: 1, 1, 64>}]} {
    %c0_i32 = arith.constant 0 : i32
    %0 = arith.cmpi eq, %arg1, %c0_i32 : i32
    %1 = arith.extui %0 : i1 to i32
    %c0_i32_0 = arith.constant 0 : i32
    %2 = arith.cmpi ne, %1, %c0_i32_0 : i32
    scf.if %2 {
      %cst = arith.constant 0.000000e+00 : f32
      %12 = vector.broadcast %cst : f32 to vector<1x1x64xf32>
      %c0 = arith.constant 0 : index
      %c0_3 = arith.constant 0 : index
      %c0_4 = arith.constant 0 : index
      %13 = vector.load %arg4[%c0, %c0_3, %c0_4] : memref<1x1x64xf32, #tpu.memory_space<vmem>>, vector<1x1x64xf32>
      tpu.vector_store %arg4[%c0, %c0_3, %c0_4], %12 {strides = array<i32>} : memref<1x1x64xf32, #tpu.memory_space<vmem>>, vector<1x1x64xf32>,
    } else {
    }
    %3 = arith.index_cast %arg0 : i32 to index
    %4 = memref.load %arg2[%3] : memref<2xi32, #tpu.memory_space<smem>>
    %c8_i32 = arith.constant 8 : i32
    %5 = arith.muli %arg1, %c8_i32 : i32
    %6 = arith.cmpi slt, %5, %4 : i32
    %7 = arith.extui %6 : i1 to i32
    %c0_i32_1 = arith.constant 0 : i32
    %8 = arith.cmpi ne, %7, %c0_i32_1 : i32
    scf.if %8 {
      %12 = tpu.iota {dimensions = array<i32: 0>} : vector<8x1xi32>
      %c8_i32_3 = arith.constant 8 : i32
      %13 = arith.muli %arg1, %c8_i32_3 : i32
      %14 = vector.broadcast %13 : i32 to vector<8x1xi32>
      %15 = arith.addi %12, %14 : vector<8x1xi32>
      %16 = vector.broadcast %4 : i32 to vector<8x1xi32>
      %17 = arith.cmpi slt, %15, %16 : vector<8x1xi32>
      %c0 = arith.constant 0 : index
      %c0_4 = arith.constant 0 : index
      %c0_5 = arith.constant 0 : index
      %18 = vector.load %arg3[%c0, %c0_4, %c0_5] : memref<1x8x64xbf16, #tpu.memory_space<vmem>>, vector<1x8x64xbf16>
      %19 = vector.shape_cast %18 : vector<1x8x64xbf16> to vector<8x64xbf16>
      %20 = arith.extf %19 : vector<8x64xbf16> to vector<8x64xf32>
      %cst = arith.constant 0.000000e+00 : f32
      %21 = vector.shape_cast %17 : vector<8x1xi1> to vector<8x1xi1>
      %22 = vector.broadcast %21 : vector<8x1xi1> to vector<8x64xi1>
      %23 = vector.broadcast %cst : f32 to vector<8x64xf32>
      %24 = arith.select %22, %20, %23 : vector<8x64xi1>, vector<8x64xf32>
      %cst_6 = arith.constant dense<0.000000e+00> : vector<64xf32>
      %25 = vector.multi_reduction <add>, %24, %cst_6 [0] : vector<8x64xf32> to vector<64xf32>
      %26 = vector.shape_cast %25 : vector<64xf32> to vector<1x64xf32>
      %c0_7 = arith.constant 0 : index
      %c0_8 = arith.constant 0 : index
      %c0_9 = arith.constant 0 : index
      %27 = vector.load %arg4[%c0_7, %c0_8, %c0_9] : memref<1x1x64xf32, #tpu.memory_space<vmem>>, vector<1x1x64xf32>
      %28 = vector.shape_cast %26 : vector<1x64xf32> to vector<1x1x64xf32>
      %29 = arith.addf %27, %28 : vector<1x1x64xf32>
      %c0_10 = arith.constant 0 : index
      %c0_11 = arith.constant 0 : index
      %c0_12 = arith.constant 0 : index
      %30 = vector.load %arg4[%c0_10, %c0_11, %c0_12] : memref<1x1x64xf32, #tpu.memory_space<vmem>>, vector<1x1x64xf32>
      tpu.vector_store %arg4[%c0_10, %c0_11, %c0_12], %29 {strides = array<i32>} : memref<1x1x64xf32, #tpu.memory_space<vmem>>, vector<1x1x64xf32>,
    } else {
    }
    %c1_i32 = arith.constant 1 : i32
    %9 = arith.cmpi eq, %arg1, %c1_i32 : i32
    %10 = arith.extui %9 : i1 to i32
    %c0_i32_2 = arith.constant 0 : i32
    %11 = arith.cmpi ne, %10, %c0_i32_2 : i32
    scf.if %11 {
      %12 = arith.sitofp %4 : i32 to f32
      %cst = arith.constant 1.000000e+00 : f32
      %13 = arith.maximumf %12, %cst : f32
      %c0 = arith.constant 0 : index
      %c0_3 = arith.constant 0 : index
      %c0_4 = arith.constant 0 : index
      %14 = vector.load %arg4[%c0, %c0_3, %c0_4] : memref<1x1x64xf32, #tpu.memory_space<vmem>>, vector<1x1x64xf32>
      %15 = vector.broadcast %13 : f32 to vector<1x1x64xf32>
      %16 = arith.divf %14, %15 : vector<1x1x64xf32>
      %c0_5 = arith.constant 0 : index
      %c0_6 = arith.constant 0 : index
      %c0_7 = arith.constant 0 : index
      %17 = vector.load %arg4[%c0_5, %c0_6, %c0_7] : memref<1x1x64xf32, #tpu.memory_space<vmem>>, vector<1x1x64xf32>
      tpu.vector_store %arg4[%c0_5, %c0_6, %c0_7], %16 {strides = array<i32>} : memref<1x1x64xf32, #tpu.memory_space<vmem>>, vector<1x1x64xf32>,
    } else {
    }
    return
  }
  func.func @transform_0(%arg0: i32, %arg1: i32, %arg2: memref<2xi32, #tpu.memory_space<smem>>) -> (i32, i32, i32) {
    %c0_i32 = arith.constant 0 : i32
    %c0_i32_0 = arith.constant 0 : i32
    return %arg0, %arg1, %c0_i32 : i32, i32, i32
  }
  func.func @transform_1(%arg0: i32, %arg1: i32, %arg2: memref<2xi32, #tpu.memory_space<smem>>) -> (i32, i32, i32) {
    %c0_i32 = arith.constant 0 : i32
    %c0_i32_0 = arith.constant 0 : i32
    %c0_i32_1 = arith.constant 0 : i32
    return %arg0, %c0_i32, %c0_i32_0 : i32, i32, i32
  }
}

</mosaic_0001>

<llo_original>
// kernel: tpu_custom_call.1
$region0: #{tpu_custom_call.1}
  #allocation0 [shape = 'u32[]', space=smem, size = 0x4, offset = 0x4, fixed_abs, tag = 'smem constant byte address 0x4 - core index']
  #allocation1 [shape = 'u32[72,128]{1,0:T(1,128)}', space=vmem, size = 0x9000, scoped, tag = 'internal scratch']
  #allocation2 [shape = 's32[1]{0}', space=sflag, size = 0x4, scoped, tag = 'scoped memory for tpu_custom_call.1']
  #allocation3 [shape = 'u8[512]{0}', space=smem, size = 0x200, scoped, tag = 'prefetched SMEM operand 0']
  %s0 = inlined_call_operand.hbm [shape: s32[2], index: 0, kind: input, shape index: {}]
  %s1 = inlined_call_operand.hbm [shape: bf16[2,16,64], index: 1, kind: input, shape index: {}]
  %s2 = inlined_call_operand.hbm [shape: f32[2,1,64], index: 2, kind: output, shape index: {}]
  %s3 = sld [smem:[#allocation0]]
  $region53: #{tpu_custom_call.1} parent=0
    _
  %s5 = ssub.s32 1, %s3
  %s6 = scalar_select 0, %s5, %s3
  %s8 = sshll.u32 %s0, 4
  %s9 = int_to_ptr.hbm [resolvable:$true] %s8
  %11 = dma.hbm_to_smem %s9, 16, [#allocation3], [#allocation2]
  %13 = dma.done [#allocation2], 16
  %14 = sfence
  $region1: #{tpu_custom_call.1} parent=0
    #allocation4 [shape = 'u8[4096]{0}', space=vmem, size = 0x1000, scoped, tag = 'input window, operand 1']
    #allocation5 [shape = 's32[2]{0}', space=sflag, size = 0x8, scoped, tag = 'scoped memory for tpu_custom_call.1']
    #allocation6 [shape = 's32[2]{0}', space=sflag, size = 0x8, scoped, tag = 'scoped memory for tpu_custom_call.1']
    #allocation7 [shape = 'u8[1024]{0}', space=vmem, size = 0x400, scoped, tag = 'output window, operand 0']
    %15 = vsyncpa [#allocation5], 0
    %s16 = scalar_lea.sflag [#allocation5], 1
    %17 = vsyncpa %s16, 0
    %18 = vsyncpa [#allocation6], 0
    %s19 = scalar_lea.sflag [#allocation6], 1
    %20 = vsyncpa %s19, 0
    loop: start=0, step=1, limit=6
    $region2: #{tpu_custom_call.1} parent=1 // loop_pre_header
      _
    $region3: #{tpu_custom_call.1} parent=1 // loop_header
      %s22 = sphi 0, %s26
      %p23 = scmp.ge.s32.totalorder %s22, 6
      %s29 = sphi 0, %s41
      %s30 = sphi 0, %s37
      %s31 = sphi 0, %s29
      %s32 = sphi 0, %s30
      %s33 = sphi 0, %s31
      %s34 = sphi 0, %s32
      %s46 = sphi 0, %s48
      %s49 = sphi 0, %s46
      %s50 = sphi 0, %s49
      %s66 = sphi 0, %s50
      %s72 = sphi 0, %s74
      %s75 = sphi 0, %s72
      %s76 = sphi 0, %s75
      %s92 = sphi 0, %s76
    $region4: #{tpu_custom_call.1} parent=1 // loop_header_branch
      %25 = sbr.rel (%p23) target = $region8
    $region5: #{tpu_custom_call.1} parent=1 // loop_body
      %s27 = ssub.s32 %s22, 1
      %s28 = ssub.s32 %s22, 2
      %s35 = sadd.s32 1, %s30
      %p36 = scmp.ge.s32.totalorder %s35, 2
      %s37 = scalar_select %p36, 0, %s35
      %s38 = sadd.s32 1, %s29
      %s39 = scalar_select %p36, %s38, %s29
      %p40 = scmp.ge.s32.totalorder %s39, 2
      %s41 = scalar_select %p40, 0, %s39
      %s42 = ssub.s32 %s29, %s41
      %s43 = ssub.s32 %s30, %s37
      %s44 = sor.u32 %s42, %s43
      %p45 = scmp.eq.s32.totalorder %s44, 0
      %s47 = sadd.s32 %s46, 1
      %s48 = scalar_select %p45, %s46, %s47
      %p51 = pneg %p45
      %p52 = scmp.eq.s32.totalorder %s22, 3
      %p53 = por %p51, %p52
      %p54 = scmp.ne.s32.totalorder %s46, %s49
      %p55 = scmp.eq.s32.totalorder %s22, 0
      %p56 = por %p54, %p55
      %p57 = scmp.ne.s32.totalorder %s46, %s49
      %p58 = scmp.eq.s32.totalorder %s27, 3
      %p59 = por %p57, %p58
      %p60 = scmp.ne.s32.totalorder %s49, %s50
      %p61 = scmp.eq.s32.totalorder %s27, 0
      %p62 = por %p60, %p61
      %p63 = scmp.ne.s32.totalorder %s49, %s50
      %p64 = scmp.eq.s32.totalorder %s28, 3
      %p65 = por %p63, %p64
      %p67 = scmp.ne.s32.totalorder %s50, %s66
      %p68 = scmp.eq.s32.totalorder %s28, 0
      %p69 = por %p67, %p68
      %s70 = ssub.s32 %s29, %s41
      %p71 = scmp.eq.s32.totalorder %s70, 0
      %s73 = sadd.s32 %s72, 1
      %s74 = scalar_select %p71, %s72, %s73
      %p77 = pneg %p71
      %p78 = scmp.eq.s32.totalorder %s22, 3
      %p79 = por %p77, %p78
      %p80 = scmp.ne.s32.totalorder %s72, %s75
      %p81 = scmp.eq.s32.totalorder %s22, 0
      %p82 = por %p80, %p81
      %p83 = scmp.ne.s32.totalorder %s72, %s75
      %p84 = scmp.eq.s32.totalorder %s27, 3
      %p85 = por %p83, %p84
      %p86 = scmp.ne.s32.totalorder %s75, %s76
      %p87 = scmp.eq.s32.totalorder %s27, 0
      %p88 = por %p86, %p87
      %p89 = scmp.ne.s32.totalorder %s75, %s76
      %p90 = scmp.eq.s32.totalorder %s28, 3
      %p91 = por %p89, %p90
      %p93 = scmp.ne.s32.totalorder %s76, %s92
      %p94 = scmp.eq.s32.totalorder %s28, 0
      %p95 = por %p93, %p94
      %p96 = scmp.le.s32.totalorder 1, %s22
      %p97 = scmp.lt.s32.totalorder %s22, 5
      %p98 = pnand %p96, %p97
      %p99 = pneg %p98
      // Predicated region
      $region9: #{tpu_custom_call.1} parent=5 // pred_check
        _
      $region10: #{tpu_custom_call.1} parent=5 // pred_check_branch
        %101 = sbr.rel (%p98) target = $region12
      $region11: #{tpu_custom_call.1} parent=5 // pred_region
        %s102 = ssub.s32 %s22, 1
      $region12: #{tpu_custom_call.1} parent=5 // pred_fallthru
        _
      %p103 = scmp.lt.s32.totalorder %s22, 4
      // Predicated region
      $region13: #{tpu_custom_call.1} parent=5 // pred_check
        %p104 = pneg %p103
      $region14: #{tpu_custom_call.1} parent=5 // pred_check_branch
        %106 = sbr.rel (%p104) target = $region16
      $region15: #{tpu_custom_call.1} parent=5 // pred_region
        // Predicated region
        $region17: #{tpu_custom_call.1} parent=15 // pred_check
          %p107 = pneg %p56
        $region18: #{tpu_custom_call.1} parent=15 // pred_check_branch
          %109 = sbr.rel (%p107) target = $region20
        $region19: #{tpu_custom_call.1} parent=15 // pred_region
          %s110 = sand.u32 %s46, 1
          %s111 = scalar_lea.sflag [#allocation5], %s110
          %s112 = sand.u32 %s46, 1
          %s113 = smul.addr %s112, 4
          %s114 = scalar_lea.vmem [#allocation4], %s113
          %116 = vsyncadd %s111, 0
          %s117 = smul.addr %s29, 2
          %s118 = sadd.s32 %s30, %s117
          %s119 = smul.addr %s118, 4
          %s120 = scalar_lea.hbm %s1, %s119
          %s122 = sshll.u32 %s120, 4
          %s123 = int_to_ptr.hbm [resolvable:$true] %s122
          %s124 = sshll.u32 %s114, 4
          %s125 = int_to_ptr.vmem [resolvable:$true] %s124
          %127 = dma.hbm_to_vmem [thread:$0]  %s123, 64, %s125, %s111
        $region20: #{tpu_custom_call.1} parent=15 // pred_fallthru
          _
      $region16: #{tpu_custom_call.1} parent=5 // pred_fallthru
        _
      %p128 = scmp.le.s32.totalorder 1, %s22
      %p129 = scmp.lt.s32.totalorder %s22, 5
      %p130 = pnand %p128, %p129
      %p131 = pneg %p130
      // Predicated region
      $region21: #{tpu_custom_call.1} parent=5 // pred_check
        _
      $region22: #{tpu_custom_call.1} parent=5 // pred_check_branch
        %133 = sbr.rel (%p130) target = $region24
      $region23: #{tpu_custom_call.1} parent=5 // pred_region
        %s134 = ssub.s32 %s22, 1
        %s135 = sand.u32 %s49, 1
        %s136 = scalar_lea.sflag [#allocation5], %s135
        %s137 = sand.u32 %s49, 1
        %s138 = smul.addr %s137, 4
        %s139 = scalar_lea.vmem [#allocation4], %s138
        // Predicated region
        $region25: #{tpu_custom_call.1} parent=23 // pred_check
          %p140 = pneg %p62
        $region26: #{tpu_custom_call.1} parent=23 // pred_check_branch
          %142 = sbr.rel (%p140) target = $region28
        $region27: #{tpu_custom_call.1} parent=23 // pred_region
          %144 = dma.done %s136, 64
        $region28: #{tpu_custom_call.1} parent=23 // pred_fallthru
          _
        %s145 = sand.u32 %s49, 1
        %s146 = scalar_lea.sflag [#allocation5], %s145
        %s147 = sand.u32 %s49, 1
        %s148 = smul.addr %s147, 4
        %s149 = scalar_lea.vmem [#allocation4], %s148
        %p150 = pneg %p62
        %p151 = pneg %p59
        %p152 = pneg %p88
        %p153 = pneg %p85
        %s154 = sand.u32 %s75, 1
        %s155 = scalar_lea.sflag [#allocation6], %s154
        %s156 = sand.u32 %s75, 1
        %s157 = scalar_lea.vmem [#allocation7], %s156
        %p158 = scmp.eq.s32.totalorder %s32, 0
        // Predicated region
        $region29: #{tpu_custom_call.1} parent=23 // pred_check
          %p159 = pneg %p158
        $region30: #{tpu_custom_call.1} parent=23 // pred_check_branch
          %161 = sbr.rel (%p159) target = $region32
        $region31: #{tpu_custom_call.1} parent=23 // pred_region
          %vm162 = vcmask 516096
          %163 = vst.msk [vmem:[%s157] sm:$0x1] %vm162, 0.0
        $region32: #{tpu_custom_call.1} parent=23 // pred_fallthru
          _
        %s164 = sld [smem:[#allocation3 + %s31]]
        %s165 = smul.u32 %s32, 8
        %p166 = scmp.lt.s32.totalorder %s165, %s164
        // Predicated region
        $region33: #{tpu_custom_call.1} parent=23 // pred_check
          %p167 = pneg %p166
        $region34: #{tpu_custom_call.1} parent=23 // pred_check_branch
          %169 = sbr.rel (%p167) target = $region36
        $region35: #{tpu_custom_call.1} parent=23 // pred_region
          %v170 = vlaneseq
          %v171 = vshrl.u32 %v170, 7
          %v172 = vstv %s165
          %v173 = vadd.s32 %v171, %v172
          %v174 = vstv %s164
          %vm175 = vcmp.lt.s32.totalorder %v173, %v174
          %v176 = vld [vmem:[%s139] sm:$0xf]
          %v177 = vunpack.c.l.bf16 %v176
          %v178 = vsel %vm175, 1, 0
          %vm179 = vcmp.eq.s32.totalorder %v178, 1
          %v180 = vsel %vm179, %v177, 0.0
          %vm181 = vcmask 523264
          %v182 = vsel %vm181, %v180, 0.0
          %v183 = vrot.slane %v182, 4
          %v184 = vadd.f32 %v182, %v183
          %v185 = vrot.slane %v184, 2
          %v186 = vadd.f32 %v184, %v185
          %v187 = vrot.slane %v186, 1
          %v188 = vadd.f32 %v186, %v187
          %v189 = vld [vmem:[%s157] sm:$0x1]
          %v190 = vadd.f32 %v189, %v188
          %vm191 = vcmask 516096
          %192 = vst.msk [vmem:[%s157] sm:$0x1] %vm191, %v190
        $region36: #{tpu_custom_call.1} parent=23 // pred_fallthru
          _
        %p193 = scmp.eq.s32.totalorder %s32, 1
        // Predicated region
        $region37: #{tpu_custom_call.1} parent=23 // pred_check
          %p194 = pneg %p193
        $region38: #{tpu_custom_call.1} parent=23 // pred_check_branch
          %196 = sbr.rel (%p194) target = $region40
        $region39: #{tpu_custom_call.1} parent=23 // pred_region
          %s197 = scvt.s32.f32 %s164
          %s198 = smax.f32 %s197, 1.0
          %v199 = vld [vmem:[%s157] sm:$0x1]
          %v200 = vstv %s198
          %v201 = vrcp.pop %v200
          %v202 = vmul.f32 %v200, %v201
          %v203 = vsub.f32 1.0, %v202
          %v204 = vmul.f32 %v201, %v203
          %v205 = vadd.f32 %v201, %v204
          %vm206 = vweird.f32 %v200
          %vm207 = vweird.f32 %v201
          %vm208 = vmor %vm206, %vm207
          %v209 = vsel %vm208, %v201, %v205
          %v210 = vand.u32 2147483647, %v200
          %vm211 = vcmp.eq.f32.partialorder %v210, 8.507059e+37
          %v212 = vand.u32 %v200, 2147483648
          %v213 = vor.u32 1.1754944e-38, %v212
          %v214 = vsel %vm211, %v213, %v209
          %v215 = vmul.f32 %v199, %v214
          %vm216 = vcmask 516096
          %217 = vst.msk [vmem:[%s157] sm:$0x1] %vm216, %v215
        $region40: #{tpu_custom_call.1} parent=23 // pred_fallthru
          _
        %s218 = sand.u32 %s75, 1
        %s219 = scalar_lea.sflag [#allocation6], %s218
        %s220 = sand.u32 %s75, 1
        %s221 = scalar_lea.vmem [#allocation7], %s220
        // Predicated region
        $region41: #{tpu_custom_call.1} parent=23 // pred_check
          %p222 = pneg %p85
        $region42: #{tpu_custom_call.1} parent=23 // pred_check_branch
          %224 = sbr.rel (%p222) target = $region44
        $region43: #{tpu_custom_call.1} parent=23 // pred_region
          %226 = vsyncadd %s219, 0
          %s227 = scalar_lea.hbm %s2, %s31
          %s229 = sshll.u32 %s221, 4
          %s230 = int_to_ptr.vmem [resolvable:$true] %s229
          %s231 = sshll.u32 %s227, 4
          %s232 = int_to_ptr.hbm [resolvable:$true] %s231
          %234 = dma.vmem_to_hbm [thread:$0]  %s230, 16, %s232, %s219
        $region44: #{tpu_custom_call.1} parent=23 // pred_fallthru
          _
      $region24: #{tpu_custom_call.1} parent=5 // pred_fallthru
        _
      %p235 = scmp.le.s32.totalorder 2, %s22
      // Predicated region
      $region45: #{tpu_custom_call.1} parent=5 // pred_check
        %p236 = pneg %p235
      $region46: #{tpu_custom_call.1} parent=5 // pred_check_branch
        %238 = sbr.rel (%p236) target = $region48
      $region47: #{tpu_custom_call.1} parent=5 // pred_region
        %s239 = ssub.s32 %s22, 2
        // Predicated region
        $region49: #{tpu_custom_call.1} parent=47 // pred_check
          %p240 = pneg %p91
        $region50: #{tpu_custom_call.1} parent=47 // pred_check_branch
          %242 = sbr.rel (%p240) target = $region52
        $region51: #{tpu_custom_call.1} parent=47 // pred_region
          %s243 = sand.u32 %s76, 1
          %s244 = scalar_lea.sflag [#allocation6], %s243
          %s245 = sand.u32 %s76, 1
          %s246 = scalar_lea.vmem [#allocation7], %s245
          %248 = dma.done %s244, 16
        $region52: #{tpu_custom_call.1} parent=47 // pred_fallthru
          _
      $region48: #{tpu_custom_call.1} parent=5 // pred_fallthru
        _
    $region6: #{tpu_custom_call.1} parent=1 // loop_footer
      %s26 = sadd.s32 1, %s22
    $region7: #{tpu_custom_call.1} parent=1 // loop_footer_branch
      %21 = sbr.rel target = $region3
    $region8: #{tpu_custom_call.1} parent=1 // loop_exit
      _
    %249 = vsyncpa [#allocation5], 1
    %s250 = scalar_lea.sflag [#allocation5], 1
    %251 = vsyncpa %s250, 1
    %252 = vsyncpa [#allocation6], 1
    %s253 = scalar_lea.sflag [#allocation6], 1
    %254 = vsyncpa %s253, 1

</llo_original>
